<compile_context>
chip_gen: v6e
topology: v6e:2x2x1
jax: 0.10.0
libtpu: 0.0.40
codegen_flags: <defaults>
</compile_context>

<pallas_src>
import jax
import jax.numpy as jnp
from jax.experimental import pallas as pl
from jax.experimental.pallas import tpu as pltpu


_VMEM_LIMIT_BYTES = 32 * 1024 * 1024   # explicit: v5e scoped default is 16 MiB
_MAX_LANE_TILE = 32768                 # keeps double-buffered working set << limit


def _round_up(x: int, m: int) -> int:
    return (x + m - 1) // m * m


def _cdiv(a: int, b: int) -> int:
    return -(-a // b)


def _alpha_list(alpha, num_classes):
    if isinstance(alpha, (list, tuple)):
        assert len(alpha) == num_classes
        return [float(x) for x in alpha]
    assert alpha < 1
    return [float(alpha)] + [1.0 - float(alpha)] * (num_classes - 1)


def _detect_num_tensorcores() -> int:
    """2 on dual-TensorCore chips (v7x-class), else 1.  Conservative on failure."""
    # TODO(synk): replace with an official per-chip TensorCore-count query.
    try:
        dev = jax.devices()[0]
        if dev.platform != "tpu":
            return 1
        return 2 if "7" in dev.device_kind.lower() else 1
    except Exception:
        return 1


def _make_focal_kernel(alpha_vals, gamma, num_classes):
    gamma_f = float(gamma)
    gamma_is_int = gamma_f.is_integer() and 0.0 <= gamma_f <= 16.0
    gamma_i = int(gamma_f) if gamma_is_int else 0

    def focal_kernel(lp_ref, lab_ref, out_ref):
        # lp_ref:  (C, 1, 8, L) f32 log-softmax, batch packed on (sublane, lane)
        # lab_ref: (1, 8, L)    int labels (padded entries = -1)
        # out_ref: (1, 1, 1)    f32 per-core running partial sum (accumulator)
        labels = lab_ref[0].astype(jnp.int32)            # (8, L)

        # "gather(1, labels)" via C unrolled lane-dense selects (pure VPU).
        # lp starts at 0 (=> p = 1) and a at 0, so padded / out-of-range labels
        # contribute exactly 0 loss.
        lp = jnp.zeros(labels.shape, jnp.float32)
        a = jnp.zeros(labels.shape, jnp.float32)
        for c in range(num_classes):
            m = labels == c
            lp = jnp.where(m, lp_ref[c, 0], lp)
            a = jnp.where(m, jnp.float32(alpha_vals[c]), a)

        # Gathered softmax probability recovered from the streamed log-softmax
        # (module contract: preds_softmax == exp(preds_logsoft)).  EUP op.
        p = jnp.exp(lp)
        one_minus_p = 1.0 - p
        if gamma_is_int:
            w = jnp.ones_like(p)
            for _ in range(gamma_i):                      # unrolled integer power
                w = w * one_minus_p
        else:
            w = jnp.power(jnp.maximum(one_minus_p, jnp.float32(1e-30)), gamma_f)

        partial = jnp.sum(a * (-(w * lp)))                # cross-lane reduce (XLU)

        @pl.when(pl.program_id(1) == 0)
        def _():
            out_ref[...] = jnp.zeros_like(out_ref)

        out_ref[...] = out_ref[...] + partial

    return focal_kernel


def _focal_loss_impl(logsoft_cb, labels_flat, alpha_vals, gamma, num_classes,
                     size_average, lane_tile, num_cores, label_dtype):
    C, B = logsoft_cb.shape
    assert C == num_classes and B >= 1
    assert labels_flat.shape == (B,)

    # Lane tile (multiple of 128); per-tile batch = 8 sublanes * L lanes.
    L = _round_up(max(128, min(int(lane_tile), _MAX_LANE_TILE)), 128)
    per_core = _cdiv(B, num_cores)
    if per_core < 8 * L:                       # small batches: shrink the tile
        L = max(128, _round_up(_cdiv(per_core, 8), 128))
    tile_b = 8 * L
    n_inner = _cdiv(per_core, tile_b)
    n_tiles = num_cores * n_inner
    padded_b = n_tiles * tile_b

    # Pad batch (lp = 0 -> p = 1, label = -1 -> a = 0 => zero contribution) and
    # pack onto (tiles, 8 sublanes, L lanes).  The reshapes are free; the
    # transpose/pad pre-pass disappears when the producer emits class-major
    # data (see focal_loss_class_major docstring).
    lp = jnp.pad(logsoft_cb.astype(jnp.float32), ((0, 0), (0, padded_b - B)))
    lp = lp.reshape(num_classes, n_tiles, 8, L)
    lab = jnp.pad(labels_flat.astype(label_dtype), (0, padded_b - B),
                  constant_values=-1)
    lab = lab.reshape(n_tiles, 8, L)

    kernel = _make_focal_kernel(alpha_vals, gamma, num_classes)

    if num_cores > 1:
        dims = (pltpu.CORE_PARALLEL, pltpu.ARBITRARY)
    else:
        dims = ("arbitrary", "arbitrary")

    cost = pl.CostEstimate(
        flops=padded_b * (4 * num_classes + 8),
        transcendentals=padded_b,
        bytes_accessed=(padded_b * num_classes * 4
                        + padded_b * jnp.dtype(label_dtype).itemsize
                        + num_cores * 4),
    )

    partials = pl.pallas_call(
        kernel,
        out_shape=jax.ShapeDtypeStruct((num_cores, 1, 1), jnp.float32),
        grid_spec=pltpu.PrefetchScalarGridSpec(
            num_scalar_prefetch=0,
            grid=(num_cores, n_inner),
            in_specs=[
                pl.BlockSpec((num_classes, 1, 8, L),
                             lambda c, i: (0, c * n_inner + i, 0, 0)),
                pl.BlockSpec((1, 8, L),
                             lambda c, i: (c * n_inner + i, 0, 0)),
            ],
            out_specs=pl.BlockSpec((1, 1, 1), lambda c, i: (c, 0, 0)),
        ),
        compiler_params=pltpu.CompilerParams(
            dimension_semantics=dims,
            vmem_limit_bytes=_VMEM_LIMIT_BYTES),
        cost_estimate=cost,
    )(lp, lab)

    total = jnp.sum(partials)
    if size_average:
        total = total / jnp.float32(B)
    return total


def focal_loss_class_major(preds_logsoft_cb, labels, alpha=0.25, gamma=2.0,
                           num_classes=5, size_average=True, lane_tile=8192,
                           num_cores=None):
    """Focal loss from class-major log-softmax (the kernel's native contract).

    preds_logsoft_cb: [C, B] f32 log-softmax -- batch contiguous on the fast
                      axis, so no transpose pre-pass is needed.
    labels:           [B] int class indices in [0, num_classes).
    """
    alpha_vals = _alpha_list(alpha, num_classes)
    labels_flat = jnp.reshape(labels, (-1,))
    if num_cores is None:
        num_cores = _detect_num_tensorcores()
    num_cores = max(1, int(num_cores))

    small_label = jnp.int8 if num_classes <= 127 else jnp.int32
    configs = [(num_cores, small_label)]
    if num_cores > 1:
        configs.append((1, small_label))
    if small_label is not jnp.int32:
        configs.append((1, jnp.int32))

    last_err = None
    for nc, ldt in configs:        # hardware/lowering-dependent graceful fallback
        try:
            return _focal_loss_impl(preds_logsoft_cb, labels_flat, alpha_vals,
                                    gamma, num_classes, size_average,
                                    lane_tile, nc, ldt)
        except Exception as e:
            last_err = e
    raise last_err


def focal_loss_pallas(preds_softmax, preds_logsoft, labels, alpha=0.25,
                      gamma=2.0, num_classes=5, size_average=True,
                      lane_tile=8192, num_cores=None):
    """Module-parity entry point ([B, C] inputs, like the PyTorch forward).

    preds_softmax is accepted for API parity but not streamed: the kernel
    gathers the streamed log-softmax and recovers p = exp(lp) in-register,
    which halves HBM traffic and never hits log(0).  Callers that can emit
    class-major ([C, B]) log-softmax should use focal_loss_class_major
    directly and skip the transpose pre-pass (biggest end-to-end win).
    """
    del preds_softmax  # see docstring
    B, C = preds_logsoft.shape
    assert C == num_classes
    return focal_loss_class_major(jnp.transpose(preds_logsoft), labels,
                                  alpha=alpha, gamma=gamma,
                                  num_classes=num_classes,
                                  size_average=size_average,
                                  lane_tile=lane_tile, num_cores=num_cores)


if __name__ == "__main__":
    key = jax.random.PRNGKey(0)

    def run_case(batch, num_classes, lane_tile):
        k1, k2 = jax.random.split(jax.random.fold_in(key, batch))
        logits = jax.random.normal(k1, (batch, num_classes), dtype=jnp.float32)
        labels = jax.random.randint(k2, (batch,), 0, num_classes, dtype=jnp.int32)

        # Glue (plain JAX): the module receives softmax / log-softmax as inputs.
        preds_softmax = jax.nn.softmax(logits, axis=-1)
        preds_logsoft = jax.nn.log_softmax(logits, axis=-1)

        loss = focal_loss_pallas(preds_softmax, preds_logsoft, labels,
                                 alpha=0.25, gamma=2, num_classes=num_classes,
                                 size_average=True, lane_tile=lane_tile)
        loss = jax.block_until_ready(loss)

        # Reference check in plain JAX (same math as the PyTorch module).
        alpha_vec = jnp.array([0.25] + [0.75] * (num_classes - 1), jnp.float32)
        idx = jnp.arange(batch)
        p = preds_softmax[idx, labels]
        lp = preds_logsoft[idx, labels]
        a = alpha_vec[labels]
        ref = jnp.mean(a * (-(1.0 - p) ** 2 * lp))
        assert jnp.allclose(loss, ref, rtol=1e-3, atol=1e-6), (float(loss), float(ref))

    # Small single-tile case (matches the module's typical [B, C] usage).
    run_case(batch=8, num_classes=5, lane_tile=8192)
    # Multi-tile case: exercises the inner-axis accumulator and batch padding.
    run_case(batch=2500, num_classes=5, lane_tile=128)

    print("KERNEL_OK")
</pallas_src>

<mosaic_0001>
module attributes {stable_mosaic.version = 11 : i64} {
  func.func @focal_kernel(%arg0: i32, %arg1: i32, %arg2: memref<5x1x8x128xf32, #tpu.memory_space<vmem>>, %arg3: memref<1x8x128xi8, #tpu.memory_space<vmem>>, %arg4: memref<1x1x1xf32, #tpu.memory_space<vmem>>) attributes {dimension_semantics = [#tpu.dimension_semantics<arbitrary>, #tpu.dimension_semantics<arbitrary>], iteration_bounds = array<i64: 1, 1>, scalar_prefetch = 0 : i64, scratch_operands = 0 : i64, tpu.core_type = #tpu.core_type<tc>, window_params = [{transform_indices = @transform_0, window_bounds = array<i64: 5, 1, 8, 128>}, {transform_indices = @transform_1, window_bounds = array<i64: 1, 8, 128>}, {transform_indices = @transform_2, window_bounds = array<i64: 1, 1, 1>}]} {
    %c0 = arith.constant 0 : index
    %c0_0 = arith.constant 0 : index
    %c0_1 = arith.constant 0 : index
    %0 = vector.load %arg3[%c0, %c0_0, %c0_1] : memref<1x8x128xi8, #tpu.memory_space<vmem>>, vector<1x8x128xi8>
    %1 = vector.shape_cast %0 : vector<1x8x128xi8> to vector<8x128xi8>
    %2 = arith.extsi %1 : vector<8x128xi8> to vector<8x128xi32>
    %cst = arith.constant 0.000000e+00 : f32
    %3 = vector.broadcast %cst : f32 to vector<8x128xf32>
    %cst_2 = arith.constant 0.000000e+00 : f32
    %4 = vector.broadcast %cst_2 : f32 to vector<8x128xf32>
    %c0_i32 = arith.constant 0 : i32
    %5 = vector.broadcast %c0_i32 : i32 to vector<8x128xi32>
    %6 = arith.cmpi eq, %2, %5 : vector<8x128xi32>
    %c0_3 = arith.constant 0 : index
    %c0_4 = arith.constant 0 : index
    %c0_5 = arith.constant 0 : index
    %c0_6 = arith.constant 0 : index
    %7 = vector.load %arg2[%c0_3, %c0_4, %c0_5, %c0_6] : memref<5x1x8x128xf32, #tpu.memory_space<vmem>>, vector<1x1x8x128xf32>
    %8 = vector.shape_cast %7 : vector<1x1x8x128xf32> to vector<8x128xf32>
    %9 = arith.select %6, %8, %3 : vector<8x128xi1>, vector<8x128xf32>
    %cst_7 = arith.constant 2.500000e-01 : f32
    %10 = vector.broadcast %cst_7 : f32 to vector<8x128xf32>
    %11 = arith.select %6, %10, %4 : vector<8x128xi1>, vector<8x128xf32>
    %c1_i32 = arith.constant 1 : i32
    %12 = vector.broadcast %c1_i32 : i32 to vector<8x128xi32>
    %13 = arith.cmpi eq, %2, %12 : vector<8x128xi32>
    %c1 = arith.constant 1 : index
    %c0_8 = arith.constant 0 : index
    %c0_9 = arith.constant 0 : index
    %c0_10 = arith.constant 0 : index
    %14 = vector.load %arg2[%c1, %c0_8, %c0_9, %c0_10] : memref<5x1x8x128xf32, #tpu.memory_space<vmem>>, vector<1x1x8x128xf32>
    %15 = vector.shape_cast %14 : vector<1x1x8x128xf32> to vector<8x128xf32>
    %16 = arith.select %13, %15, %9 : vector<8x128xi1>, vector<8x128xf32>
    %cst_11 = arith.constant 7.500000e-01 : f32
    %17 = vector.broadcast %cst_11 : f32 to vector<8x128xf32>
    %18 = arith.select %13, %17, %11 : vector<8x128xi1>, vector<8x128xf32>
    %c2_i32 = arith.constant 2 : i32
    %19 = vector.broadcast %c2_i32 : i32 to vector<8x128xi32>
    %20 = arith.cmpi eq, %2, %19 : vector<8x128xi32>
    %c2 = arith.constant 2 : index
    %c0_12 = arith.constant 0 : index
    %c0_13 = arith.constant 0 : index
    %c0_14 = arith.constant 0 : index
    %21 = vector.load %arg2[%c2, %c0_12, %c0_13, %c0_14] : memref<5x1x8x128xf32, #tpu.memory_space<vmem>>, vector<1x1x8x128xf32>
    %22 = vector.shape_cast %21 : vector<1x1x8x128xf32> to vector<8x128xf32>
    %23 = arith.select %20, %22, %16 : vector<8x128xi1>, vector<8x128xf32>
    %cst_15 = arith.constant 7.500000e-01 : f32
    %24 = vector.broadcast %cst_15 : f32 to vector<8x128xf32>
    %25 = arith.select %20, %24, %18 : vector<8x128xi1>, vector<8x128xf32>
    %c3_i32 = arith.constant 3 : i32
    %26 = vector.broadcast %c3_i32 : i32 to vector<8x128xi32>
    %27 = arith.cmpi eq, %2, %26 : vector<8x128xi32>
    %c3 = arith.constant 3 : index
    %c0_16 = arith.constant 0 : index
    %c0_17 = arith.constant 0 : index
    %c0_18 = arith.constant 0 : index
    %28 = vector.load %arg2[%c3, %c0_16, %c0_17, %c0_18] : memref<5x1x8x128xf32, #tpu.memory_space<vmem>>, vector<1x1x8x128xf32>
    %29 = vector.shape_cast %28 : vector<1x1x8x128xf32> to vector<8x128xf32>
    %30 = arith.select %27, %29, %23 : vector<8x128xi1>, vector<8x128xf32>
    %cst_19 = arith.constant 7.500000e-01 : f32
    %31 = vector.broadcast %cst_19 : f32 to vector<8x128xf32>
    %32 = arith.select %27, %31, %25 : vector<8x128xi1>, vector<8x128xf32>
    %c4_i32 = arith.constant 4 : i32
    %33 = vector.broadcast %c4_i32 : i32 to vector<8x128xi32>
    %34 = arith.cmpi eq, %2, %33 : vector<8x128xi32>
    %c4 = arith.constant 4 : index
    %c0_20 = arith.constant 0 : index
    %c0_21 = arith.constant 0 : index
    %c0_22 = arith.constant 0 : index
    %35 = vector.load %arg2[%c4, %c0_20, %c0_21, %c0_22] : memref<5x1x8x128xf32, #tpu.memory_space<vmem>>, vector<1x1x8x128xf32>
    %36 = vector.shape_cast %35 : vector<1x1x8x128xf32> to vector<8x128xf32>
    %37 = arith.select %34, %36, %30 : vector<8x128xi1>, vector<8x128xf32>
    %cst_23 = arith.constant 7.500000e-01 : f32
    %38 = vector.broadcast %cst_23 : f32 to vector<8x128xf32>
    %39 = arith.select %34, %38, %32 : vector<8x128xi1>, vector<8x128xf32>
    %40 = math.exp %37 : vector<8x128xf32>
    %cst_24 = arith.constant 1.000000e+00 : f32
    %41 = vector.broadcast %cst_24 : f32 to vector<8x128xf32>
    %42 = arith.subf %41, %40 : vector<8x128xf32>
    %cst_25 = arith.constant 1.000000e+00 : f32
    %43 = vector.broadcast %cst_25 : f32 to vector<8x128xf32>
    %44 = arith.mulf %43, %42 : vector<8x128xf32>
    %45 = arith.mulf %44, %42 : vector<8x128xf32>
    %46 = arith.mulf %45, %37 : vector<8x128xf32>
    %cst_26 = arith.constant 0.000000e+00 : f32
    %47 = vector.broadcast %cst_26 : f32 to vector<8x128xf32>
    %48 = arith.subf %47, %46 : vector<8x128xf32>
    %49 = arith.mulf %39, %48 : vector<8x128xf32>
    %50 = vector.shape_cast %49 : vector<8x128xf32> to vector<1x8x128xf32>
    %cst_27 = arith.constant dense<0.000000e+00> : vector<1xf32>
    %51 = vector.multi_reduction <add>, %50, %cst_27 [1, 2] : vector<1x8x128xf32> to vector<1xf32>
    %52 = vector.shape_cast %51 : vector<1xf32> to vector<1x1x1xf32>
    %53 = vector.extract %52[0, 0, 0] : f32 from vector<1x1x1xf32>
    %c0_i32_28 = arith.constant 0 : i32
    %54 = arith.cmpi eq, %arg1, %c0_i32_28 : i32
    %55 = arith.extui %54 : i1 to i32
    %c0_i32_29 = arith.constant 0 : i32
    %56 = arith.cmpi ne, %55, %c0_i32_29 : i32
    scf.if %56 {
      %cst_36 = arith.constant 0.000000e+00 : f32
      %61 = vector.broadcast %cst_36 : f32 to vector<1x1x1xf32>
      %c0_37 = arith.constant 0 : index
      %c0_38 = arith.constant 0 : index
      %c0_39 = arith.constant 0 : index
      %62 = vector.load %arg4[%c0_37, %c0_38, %c0_39] : memref<1x1x1xf32, #tpu.memory_space<vmem>>, vector<1x1x1xf32>
      tpu.vector_store %arg4[%c0_37, %c0_38, %c0_39], %61 {strides = array<i32>} : memref<1x1x1xf32, #tpu.memory_space<vmem>>, vector<1x1x1xf32>,
    } else {
    }
    %c0_30 = arith.constant 0 : index
    %c0_31 = arith.constant 0 : index
    %c0_32 = arith.constant 0 : index
    %57 = vector.load %arg4[%c0_30, %c0_31, %c0_32] : memref<1x1x1xf32, #tpu.memory_space<vmem>>, vector<1x1x1xf32>
    %58 = vector.broadcast %53 : f32 to vector<1x1x1xf32>
    %59 = arith.addf %57, %58 : vector<1x1x1xf32>
    %c0_33 = arith.constant 0 : index
    %c0_34 = arith.constant 0 : index
    %c0_35 = arith.constant 0 : index
    %60 = vector.load %arg4[%c0_33, %c0_34, %c0_35] : memref<1x1x1xf32, #tpu.memory_space<vmem>>, vector<1x1x1xf32>
    tpu.vector_store %arg4[%c0_33, %c0_34, %c0_35], %59 {strides = array<i32>} : memref<1x1x1xf32, #tpu.memory_space<vmem>>, vector<1x1x1xf32>,
    return
  }
  func.func @transform_0(%arg0: i32, %arg1: i32) -> (i32, i32, i32, i32) {
    %c1_i32 = arith.constant 1 : i32
    %0 = arith.muli %arg0, %c1_i32 : i32
    %1 = arith.addi %0, %arg1 : i32
    %c0_i32 = arith.constant 0 : i32
    %c0_i32_0 = arith.constant 0 : i32
    %c0_i32_1 = arith.constant 0 : i32
    %c0_i32_2 = arith.constant 0 : i32
    return %c0_i32, %1, %c0_i32_0, %c0_i32_1 : i32, i32, i32, i32
  }
  func.func @transform_1(%arg0: i32, %arg1: i32) -> (i32, i32, i32) {
    %c1_i32 = arith.constant 1 : i32
    %0 = arith.muli %arg0, %c1_i32 : i32
    %1 = arith.addi %0, %arg1 : i32
    %c0_i32 = arith.constant 0 : i32
    %c0_i32_0 = arith.constant 0 : i32
    %c0_i32_1 = arith.constant 0 : i32
    return %1, %c0_i32, %c0_i32_0 : i32, i32, i32
  }
  func.func @transform_2(%arg0: i32, %arg1: i32) -> (i32, i32, i32) {
    %c0_i32 = arith.constant 0 : i32
    %c0_i32_0 = arith.constant 0 : i32
    %c0_i32_1 = arith.constant 0 : i32
    return %arg0, %c0_i32, %c0_i32_0 : i32, i32, i32
  }
}

module attributes {stable_mosaic.version = 11 : i64} {
  func.func @focal_kernel(%arg0: i32, %arg1: i32, %arg2: memref<5x1x8x128xf32, #tpu.memory_space<vmem>>, %arg3: memref<1x8x128xi32, #tpu.memory_space<vmem>>, %arg4: memref<1x1x1xf32, #tpu.memory_space<vmem>>) attributes {dimension_semantics = [#tpu.dimension_semantics<arbitrary>, #tpu.dimension_semantics<arbitrary>], iteration_bounds = array<i64: 1, 1>, scalar_prefetch = 0 : i64, scratch_operands = 0 : i64, tpu.core_type = #tpu.core_type<tc>, window_params = [{transform_indices = @transform_0, window_bounds = array<i64: 5, 1, 8, 128>}, {transform_indices = @transform_1, window_bounds = array<i64: 1, 8, 128>}, {transform_indices = @transform_2, window_bounds = array<i64: 1, 1, 1>}]} {
    %c0 = arith.constant 0 : index
    %c0_0 = arith.constant 0 : index
    %c0_1 = arith.constant 0 : index
    %0 = vector.load %arg3[%c0, %c0_0, %c0_1] : memref<1x8x128xi32, #tpu.memory_space<vmem>>, vector<1x8x128xi32>
    %1 = vector.shape_cast %0 : vector<1x8x128xi32> to vector<8x128xi32>
    %cst = arith.constant 0.000000e+00 : f32
    %2 = vector.broadcast %cst : f32 to vector<8x128xf32>
    %cst_2 = arith.constant 0.000000e+00 : f32
    %3 = vector.broadcast %cst_2 : f32 to vector<8x128xf32>
    %c0_i32 = arith.constant 0 : i32
    %4 = vector.broadcast %c0_i32 : i32 to vector<8x128xi32>
    %5 = arith.cmpi eq, %1, %4 : vector<8x128xi32>
    %c0_3 = arith.constant 0 : index
    %c0_4 = arith.constant 0 : index
    %c0_5 = arith.constant 0 : index
    %c0_6 = arith.constant 0 : index
    %6 = vector.load %arg2[%c0_3, %c0_4, %c0_5, %c0_6] : memref<5x1x8x128xf32, #tpu.memory_space<vmem>>, vector<1x1x8x128xf32>
    %7 = vector.shape_cast %6 : vector<1x1x8x128xf32> to vector<8x128xf32>
    %8 = arith.select %5, %7, %2 : vector<8x128xi1>, vector<8x128xf32>
    %cst_7 = arith.constant 2.500000e-01 : f32
    %9 = vector.broadcast %cst_7 : f32 to vector<8x128xf32>
    %10 = arith.select %5, %9, %3 : vector<8x128xi1>, vector<8x128xf32>
    %c1_i32 = arith.constant 1 : i32
    %11 = vector.broadcast %c1_i32 : i32 to vector<8x128xi32>
    %12 = arith.cmpi eq, %1, %11 : vector<8x128xi32>
    %c1 = arith.constant 1 : index
    %c0_8 = arith.constant 0 : index
    %c0_9 = arith.constant 0 : index
    %c0_10 = arith.constant 0 : index
    %13 = vector.load %arg2[%c1, %c0_8, %c0_9, %c0_10] : memref<5x1x8x128xf32, #tpu.memory_space<vmem>>, vector<1x1x8x128xf32>
    %14 = vector.shape_cast %13 : vector<1x1x8x128xf32> to vector<8x128xf32>
    %15 = arith.select %12, %14, %8 : vector<8x128xi1>, vector<8x128xf32>
    %cst_11 = arith.constant 7.500000e-01 : f32
    %16 = vector.broadcast %cst_11 : f32 to vector<8x128xf32>
    %17 = arith.select %12, %16, %10 : vector<8x128xi1>, vector<8x128xf32>
    %c2_i32 = arith.constant 2 : i32
    %18 = vector.broadcast %c2_i32 : i32 to vector<8x128xi32>
    %19 = arith.cmpi eq, %1, %18 : vector<8x128xi32>
    %c2 = arith.constant 2 : index
    %c0_12 = arith.constant 0 : index
    %c0_13 = arith.constant 0 : index
    %c0_14 = arith.constant 0 : index
    %20 = vector.load %arg2[%c2, %c0_12, %c0_13, %c0_14] : memref<5x1x8x128xf32, #tpu.memory_space<vmem>>, vector<1x1x8x128xf32>
    %21 = vector.shape_cast %20 : vector<1x1x8x128xf32> to vector<8x128xf32>
    %22 = arith.select %19, %21, %15 : vector<8x128xi1>, vector<8x128xf32>
    %cst_15 = arith.constant 7.500000e-01 : f32
    %23 = vector.broadcast %cst_15 : f32 to vector<8x128xf32>
    %24 = arith.select %19, %23, %17 : vector<8x128xi1>, vector<8x128xf32>
    %c3_i32 = arith.constant 3 : i32
    %25 = vector.broadcast %c3_i32 : i32 to vector<8x128xi32>
    %26 = arith.cmpi eq, %1, %25 : vector<8x128xi32>
    %c3 = arith.constant 3 : index
    %c0_16 = arith.constant 0 : index
    %c0_17 = arith.constant 0 : index
    %c0_18 = arith.constant 0 : index
    %27 = vector.load %arg2[%c3, %c0_16, %c0_17, %c0_18] : memref<5x1x8x128xf32, #tpu.memory_space<vmem>>, vector<1x1x8x128xf32>
    %28 = vector.shape_cast %27 : vector<1x1x8x128xf32> to vector<8x128xf32>
    %29 = arith.select %26, %28, %22 : vector<8x128xi1>, vector<8x128xf32>
    %cst_19 = arith.constant 7.500000e-01 : f32
    %30 = vector.broadcast %cst_19 : f32 to vector<8x128xf32>
    %31 = arith.select %26, %30, %24 : vector<8x128xi1>, vector<8x128xf32>
    %c4_i32 = arith.constant 4 : i32
    %32 = vector.broadcast %c4_i32 : i32 to vector<8x128xi32>
    %33 = arith.cmpi eq, %1, %32 : vector<8x128xi32>
    %c4 = arith.constant 4 : index
    %c0_20 = arith.constant 0 : index
    %c0_21 = arith.constant 0 : index
    %c0_22 = arith.constant 0 : index
    %34 = vector.load %arg2[%c4, %c0_20, %c0_21, %c0_22] : memref<5x1x8x128xf32, #tpu.memory_space<vmem>>, vector<1x1x8x128xf32>
    %35 = vector.shape_cast %34 : vector<1x1x8x128xf32> to vector<8x128xf32>
    %36 = arith.select %33, %35, %29 : vector<8x128xi1>, vector<8x128xf32>
    %cst_23 = arith.constant 7.500000e-01 : f32
    %37 = vector.broadcast %cst_23 : f32 to vector<8x128xf32>
    %38 = arith.select %33, %37, %31 : vector<8x128xi1>, vector<8x128xf32>
    %39 = math.exp %36 : vector<8x128xf32>
    %cst_24 = arith.constant 1.000000e+00 : f32
    %40 = vector.broadcast %cst_24 : f32 to vector<8x128xf32>
    %41 = arith.subf %40, %39 : vector<8x128xf32>
    %cst_25 = arith.constant 1.000000e+00 : f32
    %42 = vector.broadcast %cst_25 : f32 to vector<8x128xf32>
    %43 = arith.mulf %42, %41 : vector<8x128xf32>
    %44 = arith.mulf %43, %41 : vector<8x128xf32>
    %45 = arith.mulf %44, %36 : vector<8x128xf32>
    %cst_26 = arith.constant 0.000000e+00 : f32
    %46 = vector.broadcast %cst_26 : f32 to vector<8x128xf32>
    %47 = arith.subf %46, %45 : vector<8x128xf32>
    %48 = arith.mulf %38, %47 : vector<8x128xf32>
    %49 = vector.shape_cast %48 : vector<8x128xf32> to vector<1x8x128xf32>
    %cst_27 = arith.constant dense<0.000000e+00> : vector<1xf32>
    %50 = vector.multi_reduction <add>, %49, %cst_27 [1, 2] : vector<1x8x128xf32> to vector<1xf32>
    %51 = vector.shape_cast %50 : vector<1xf32> to vector<1x1x1xf32>
    %52 = vector.extract %51[0, 0, 0] : f32 from vector<1x1x1xf32>
    %c0_i32_28 = arith.constant 0 : i32
    %53 = arith.cmpi eq, %arg1, %c0_i32_28 : i32
    %54 = arith.extui %53 : i1 to i32
    %c0_i32_29 = arith.constant 0 : i32
    %55 = arith.cmpi ne, %54, %c0_i32_29 : i32
    scf.if %55 {
      %cst_36 = arith.constant 0.000000e+00 : f32
      %60 = vector.broadcast %cst_36 : f32 to vector<1x1x1xf32>
      %c0_37 = arith.constant 0 : index
      %c0_38 = arith.constant 0 : index
      %c0_39 = arith.constant 0 : index
      %61 = vector.load %arg4[%c0_37, %c0_38, %c0_39] : memref<1x1x1xf32, #tpu.memory_space<vmem>>, vector<1x1x1xf32>
      tpu.vector_store %arg4[%c0_37, %c0_38, %c0_39], %60 {strides = array<i32>} : memref<1x1x1xf32, #tpu.memory_space<vmem>>, vector<1x1x1xf32>,
    } else {
    }
    %c0_30 = arith.constant 0 : index
    %c0_31 = arith.constant 0 : index
    %c0_32 = arith.constant 0 : index
    %56 = vector.load %arg4[%c0_30, %c0_31, %c0_32] : memref<1x1x1xf32, #tpu.memory_space<vmem>>, vector<1x1x1xf32>
    %57 = vector.broadcast %52 : f32 to vector<1x1x1xf32>
    %58 = arith.addf %56, %57 : vector<1x1x1xf32>
    %c0_33 = arith.constant 0 : index
    %c0_34 = arith.constant 0 : index
    %c0_35 = arith.constant 0 : index
    %59 = vector.load %arg4[%c0_33, %c0_34, %c0_35] : memref<1x1x1xf32, #tpu.memory_space<vmem>>, vector<1x1x1xf32>
    tpu.vector_store %arg4[%c0_33, %c0_34, %c0_35], %58 {strides = array<i32>} : memref<1x1x1xf32, #tpu.memory_space<vmem>>, vector<1x1x1xf32>,
    return
  }
  func.func @transform_0(%arg0: i32, %arg1: i32) -> (i32, i32, i32, i32) {
    %c1_i32 = arith.constant 1 : i32
    %0 = arith.muli %arg0, %c1_i32 : i32
    %1 = arith.addi %0, %arg1 : i32
    %c0_i32 = arith.constant 0 : i32
    %c0_i32_0 = arith.constant 0 : i32
    %c0_i32_1 = arith.constant 0 : i32
    %c0_i32_2 = arith.constant 0 : i32
    return %c0_i32, %1, %c0_i32_0, %c0_i32_1 : i32, i32, i32, i32
  }
  func.func @transform_1(%arg0: i32, %arg1: i32) -> (i32, i32, i32) {
    %c1_i32 = arith.constant 1 : i32
    %0 = arith.muli %arg0, %c1_i32 : i32
    %1 = arith.addi %0, %arg1 : i32
    %c0_i32 = arith.constant 0 : i32
    %c0_i32_0 = arith.constant 0 : i32
    %c0_i32_1 = arith.constant 0 : i32
    return %1, %c0_i32, %c0_i32_0 : i32, i32, i32
  }
  func.func @transform_2(%arg0: i32, %arg1: i32) -> (i32, i32, i32) {
    %c0_i32 = arith.constant 0 : i32
    %c0_i32_0 = arith.constant 0 : i32
    %c0_i32_1 = arith.constant 0 : i32
    return %arg0, %c0_i32, %c0_i32_0 : i32, i32, i32
  }
}

</mosaic_0001>

<llo_original>
// kernel: tpu_custom_call.1
$region0: #{tpu_custom_call.1}
  #allocation0 [shape = 'u32[]', space=smem, size = 0x4, offset = 0x4, fixed_abs, tag = 'smem constant byte address 0x4 - core index']
  #allocation1 [shape = 'u32[144,128]{1,0:T(1,128)}', space=vmem, size = 0x12000, scoped, tag = 'internal scratch']
  %s0 = inlined_call_operand.hbm [shape: f32[5,1,8,128], index: 0, kind: input, shape index: {}]
  %s1 = inlined_call_operand.hbm [shape: s8[1,8,128], index: 1, kind: input, shape index: {}]
  %s2 = inlined_call_operand.hbm [shape: f32[1,1,1], index: 2, kind: output, shape index: {}]
  %s3 = sld [smem:[#allocation0]]
  $region30: #{tpu_custom_call.1} parent=0
    _
  %s5 = ssub.s32 1, %s3
  %s6 = scalar_select 0, %s5, %s3
  $region1: #{tpu_custom_call.1} parent=0
    #allocation2 [shape = 'u8[20480]{0}', space=vmem, size = 0x5000, scoped, tag = 'input window, operand 0, single buffered']
    #allocation3 [shape = 's32[1]{0}', space=sflag, size = 0x4, scoped, tag = 'scoped memory for tpu_custom_call.1']
    #allocation4 [shape = 's32[1]{0}', space=sflag, size = 0x4, scoped, tag = 'scoped memory for tpu_custom_call.1']
    #allocation5 [shape = 'u8[1024]{0}', space=vmem, size = 0x400, scoped, tag = 'input window, operand 1, single buffered']
    #allocation6 [shape = 's32[1]{0}', space=sflag, size = 0x4, scoped, tag = 'scoped memory for tpu_custom_call.1']
    #allocation7 [shape = 'u8[512]{0}', space=vmem, size = 0x400, scoped, tag = 'output window, operand 0, single buffered']
    %7 = vsyncpa [#allocation3], 0
    %8 = vsyncpa [#allocation6], 0
    %9 = vsyncpa [#allocation4], 0
    // Predicated region
    $region2: #{tpu_custom_call.1} parent=1 // pred_check
      _
    $region3: #{tpu_custom_call.1} parent=1 // pred_check_branch
      %11 = sbr.rel (0) target = $region5
    $region4: #{tpu_custom_call.1} parent=1 // pred_region
      %s12 = sadd.s32 0, 0
      %s14 = ssub.s32 640, 640
      %15 = vsyncadd [#allocation3], %s14
      %s16 = smul.addr %s12, 128
      %s17 = scalar_lea.hbm %s0, %s16
      %s18 = sshll.u32 [#allocation2], 4
      %s19 = int_to_ptr.vmem [resolvable:$true] %s18
      %24 = dma.hbm_to_vmem [thread:$0]  %s17, 640, %s19, [#allocation3], 128, 128, 8
    $region5: #{tpu_custom_call.1} parent=1 // pred_fallthru
      _
    // Predicated region
    $region6: #{tpu_custom_call.1} parent=1 // pred_check
      _
    $region7: #{tpu_custom_call.1} parent=1 // pred_check_branch
      %26 = sbr.rel (0) target = $region9
    $region8: #{tpu_custom_call.1} parent=1 // pred_region
      %s27 = sadd.s32 0, 0
      %s29 = ssub.s32 32, 32
      %30 = vsyncadd [#allocation6], %s29
      %s31 = smul.addr %s27, 32
      %s32 = scalar_lea.hbm %s1, %s31
      %s34 = sshll.u32 [#allocation5], 4
      %s35 = int_to_ptr.vmem [resolvable:$true] %s34
      %37 = dma.hbm_to_vmem [thread:$0]  %s32, 32, %s35, [#allocation6]
    $region9: #{tpu_custom_call.1} parent=1 // pred_fallthru
      _
    // Predicated region
    $region10: #{tpu_custom_call.1} parent=1 // pred_check
      _
    $region11: #{tpu_custom_call.1} parent=1 // pred_check_branch
      %39 = sbr.rel (0) target = $region13
    $region12: #{tpu_custom_call.1} parent=1 // pred_region
      %40 = dma.done [#allocation3], 640
    $region13: #{tpu_custom_call.1} parent=1 // pred_fallthru
      _
    // Predicated region
    $region14: #{tpu_custom_call.1} parent=1 // pred_check
      _
    $region15: #{tpu_custom_call.1} parent=1 // pred_check_branch
      %42 = sbr.rel (0) target = $region17
    $region16: #{tpu_custom_call.1} parent=1 // pred_region
      %43 = dma.done [#allocation6], 32
    $region17: #{tpu_custom_call.1} parent=1 // pred_fallthru
      _
    %s44 = sadd.s32 0, 0
    %s45 = sadd.s32 0, 0
    %v46 = vld [vmem:[#allocation5] sm:$0x3]
    %v47 = vunpack.c.0.s8 %v46
    %vm48 = vcmp.eq.s32.totalorder %v47, 0
    %v49 = vld [vmem:[#allocation2] sm:$0xff]
    %v50 = vsel %vm48, %v49, 0.0
    %v51 = vsel %vm48, 0.25, 0.0
    %vm52 = vcmp.eq.s32.totalorder %v47, 1
    %s53 = scalar_lea.vmem [#allocation2], 8
    %v54 = vld [vmem:[%s53] sm:$0xff]
    %v55 = vsel %vm52, %v54, %v50
    %v56 = vsel %vm52, 0.75, %v51
    %vm57 = vcmp.eq.s32.totalorder %v47, 2
    %s58 = scalar_lea.vmem [#allocation2], 16
    %v59 = vld [vmem:[%s58] sm:$0xff]
    %v60 = vsel %vm57, %v59, %v55
    %v61 = vsel %vm57, 0.75, %v56
    %vm62 = vcmp.eq.s32.totalorder %v47, 3
    %s63 = scalar_lea.vmem [#allocation2], 24
    %v64 = vld [vmem:[%s63] sm:$0xff]
    %v65 = vsel %vm62, %v64, %v60
    %v66 = vsel %vm62, 0.75, %v61
    %vm67 = vcmp.eq.s32.totalorder %v47, 4
    %s68 = scalar_lea.vmem [#allocation2], 32
    %v69 = vld [vmem:[%s68] sm:$0xff]
    %v70 = vsel %vm67, %v69, %v65
    %v71 = vsel %vm67, 0.75, %v66
    %v72 = vmul.f32 %v70, 1.442695
    %v73 = vpow.pop %v72
    %v74 = vsub.f32 1.0, %v73
    %v75 = vmul.f32 %v74, %v74
    %v76 = vmul.f32 %v75, %v70
    %v77 = vsub.f32 0.0, %v76
    %v78 = vmul.f32 %v71, %v77
    %79 = vadd.xlane.f32.xlu0 %v78
    %v80 = vpop.xlane.xlu0 %79
    %v81 = vrot.slane %v80, 4
    %v82 = vadd.f32 %v80, %v81
    %v83 = vrot.slane %v82, 2
    %v84 = vadd.f32 %v82, %v83
    %v85 = vrot.slane %v84, 1
    %v86 = vadd.f32 %v84, %v85
    %s87 = vtos %v86
    %p88 = scmp.eq.s32.totalorder 0, 0
    // Predicated region
    $region18: #{tpu_custom_call.1} parent=1 // pred_check
      %p89 = pneg %p88
    $region19: #{tpu_custom_call.1} parent=1 // pred_check_branch
      %91 = sbr.rel (%p89) target = $region21
    $region20: #{tpu_custom_call.1} parent=1 // pred_region
      %vm92 = vcmask 0
      %93 = vst.msk [vmem:[#allocation7] sm:$0x1] %vm92, 0.0
    $region21: #{tpu_custom_call.1} parent=1 // pred_fallthru
      _
    %v94 = vld [vmem:[#allocation7] sm:$0x1]
    %v95 = vstv %s87
    %v96 = vadd.f32 %v94, %v95
    %vm97 = vcmask 0
    %98 = vst.msk [vmem:[#allocation7] sm:$0x1] %vm97, %v96
    // Predicated region
    $region22: #{tpu_custom_call.1} parent=1 // pred_check
      _
    $region23: #{tpu_custom_call.1} parent=1 // pred_check_branch
      %100 = sbr.rel (0) target = $region25
    $region24: #{tpu_custom_call.1} parent=1 // pred_region
      %s102 = ssub.s32 16, 16
      %103 = vsyncadd [#allocation4], %s102
      %s105 = sshll.u32 [#allocation7], 4
      %s106 = int_to_ptr.vmem [resolvable:$true] %s105
      %108 = dma.vmem_to_hbm [thread:$0]  %s106, 16, %s2, [#allocation4]
    $region25: #{tpu_custom_call.1} parent=1 // pred_fallthru
      _
    // Predicated region
    $region26: #{tpu_custom_call.1} parent=1 // pred_check
      _
    $region27: #{tpu_custom_call.1} parent=1 // pred_check_branch
      %110 = sbr.rel (0) target = $region29
    $region28: #{tpu_custom_call.1} parent=1 // pred_region
      %111 = dma.done [#allocation4], 16
    $region29: #{tpu_custom_call.1} parent=1 // pred_fallthru
      _
    %112 = vsyncpa [#allocation3], 1
    %113 = vsyncpa [#allocation6], 1
    %114 = vsyncpa [#allocation4], 1

// kernel: tpu_custom_call.1
$region0: #{tpu_custom_call.1}
  #allocation0 [shape = 'u32[]', space=smem, size = 0x4, offset = 0x4, fixed_abs, tag = 'smem constant byte address 0x4 - core index']
  #allocation1 [shape = 'u32[144,128]{1,0:T(1,128)}', space=vmem, size = 0x12000, scoped, tag = 'internal scratch']
  %s0 = inlined_call_operand.hbm [shape: f32[5,1,8,128], index: 0, kind: input, shape index: {}]
  %s1 = inlined_call_operand.hbm [shape: s32[1,8,128], index: 1, kind: input, shape index: {}]
  %s2 = inlined_call_operand.hbm [shape: f32[1,1,1], index: 2, kind: output, shape index: {}]
  %s3 = sld [smem:[#allocation0]]
  $region30: #{tpu_custom_call.1} parent=0
    _
  %s5 = ssub.s32 1, %s3
  %s6 = scalar_select 0, %s5, %s3
  $region1: #{tpu_custom_call.1} parent=0
    #allocation2 [shape = 'u8[20480]{0}', space=vmem, size = 0x5000, scoped, tag = 'input window, operand 0, single buffered']
    #allocation3 [shape = 's32[1]{0}', space=sflag, size = 0x4, scoped, tag = 'scoped memory for tpu_custom_call.1']
    #allocation4 [shape = 's32[1]{0}', space=sflag, size = 0x4, scoped, tag = 'scoped memory for tpu_custom_call.1']
    #allocation5 [shape = 'u8[4096]{0}', space=vmem, size = 0x1000, scoped, tag = 'input window, operand 1, single buffered']
    #allocation6 [shape = 's32[1]{0}', space=sflag, size = 0x4, scoped, tag = 'scoped memory for tpu_custom_call.1']
    #allocation7 [shape = 'u8[512]{0}', space=vmem, size = 0x400, scoped, tag = 'output window, operand 0, single buffered']
    %7 = vsyncpa [#allocation3], 0
    %8 = vsyncpa [#allocation6], 0
    %9 = vsyncpa [#allocation4], 0
    // Predicated region
    $region2: #{tpu_custom_call.1} parent=1 // pred_check
      _
    $region3: #{tpu_custom_call.1} parent=1 // pred_check_branch
      %11 = sbr.rel (0) target = $region5
    $region4: #{tpu_custom_call.1} parent=1 // pred_region
      %s12 = sadd.s32 0, 0
      %s14 = ssub.s32 640, 640
      %15 = vsyncadd [#allocation3], %s14
      %s16 = smul.addr %s12, 128
      %s17 = scalar_lea.hbm %s0, %s16
      %s18 = sshll.u32 [#allocation2], 4
      %s19 = int_to_ptr.vmem [resolvable:$true] %s18
      %24 = dma.hbm_to_vmem [thread:$0]  %s17, 640, %s19, [#allocation3], 128, 128, 8
    $region5: #{tpu_custom_call.1} parent=1 // pred_fallthru
      _
    // Predicated region
    $region6: #{tpu_custom_call.1} parent=1 // pred_check
      _
    $region7: #{tpu_custom_call.1} parent=1 // pred_check_branch
      %26 = sbr.rel (0) target = $region9
    $region8: #{tpu_custom_call.1} parent=1 // pred_region
      %s27 = sadd.s32 0, 0
      %s29 = ssub.s32 128, 128
      %30 = vsyncadd [#allocation6], %s29
      %s31 = smul.addr %s27, 128
      %s32 = scalar_lea.hbm %s1, %s31
      %s34 = sshll.u32 [#allocation5], 4
      %s35 = int_to_ptr.vmem [resolvable:$true] %s34
      %37 = dma.hbm_to_vmem [thread:$0]  %s32, 128, %s35, [#allocation6]
    $region9: #{tpu_custom_call.1} parent=1 // pred_fallthru
      _
    // Predicated region
    $region10: #{tpu_custom_call.1} parent=1 // pred_check
      _
    $region11: #{tpu_custom_call.1} parent=1 // pred_check_branch
      %39 = sbr.rel (0) target = $region13
    $region12: #{tpu_custom_call.1} parent=1 // pred_region
      %40 = dma.done [#allocation3], 640
    $region13: #{tpu_custom_call.1} parent=1 // pred_fallthru
      _
    // Predicated region
    $region14: #{tpu_custom_call.1} parent=1 // pred_check
      _
    $region15: #{tpu_custom_call.1} parent=1 // pred_check_branch
      %42 = sbr.rel (0) target = $region17
    $region16: #{tpu_custom_call.1} parent=1 // pred_region
      %43 = dma.done [#allocation6], 128
    $region17: #{tpu_custom_call.1} parent=1 // pred_fallthru
      _
    %s44 = sadd.s32 0, 0
    %s45 = sadd.s32 0, 0
    %v46 = vld [vmem:[#allocation5] sm:$0xff]
    %vm47 = vcmp.eq.s32.totalorder %v46, 0
    %v48 = vld [vmem:[#allocation2] sm:$0xff]
    %v49 = vsel %vm47, %v48, 0.0
    %v50 = vsel %vm47, 0.25, 0.0
    %vm51 = vcmp.eq.s32.totalorder %v46, 1
    %s52 = scalar_lea.vmem [#allocation2], 8
    %v53 = vld [vmem:[%s52] sm:$0xff]
    %v54 = vsel %vm51, %v53, %v49
    %v55 = vsel %vm51, 0.75, %v50
    %vm56 = vcmp.eq.s32.totalorder %v46, 2
    %s57 = scalar_lea.vmem [#allocation2], 16
    %v58 = vld [vmem:[%s57] sm:$0xff]
    %v59 = vsel %vm56, %v58, %v54
    %v60 = vsel %vm56, 0.75, %v55
    %vm61 = vcmp.eq.s32.totalorder %v46, 3
    %s62 = scalar_lea.vmem [#allocation2], 24
    %v63 = vld [vmem:[%s62] sm:$0xff]
    %v64 = vsel %vm61, %v63, %v59
    %v65 = vsel %vm61, 0.75, %v60
    %vm66 = vcmp.eq.s32.totalorder %v46, 4
    %s67 = scalar_lea.vmem [#allocation2], 32
    %v68 = vld [vmem:[%s67] sm:$0xff]
    %v69 = vsel %vm66, %v68, %v64
    %v70 = vsel %vm66, 0.75, %v65
    %v71 = vmul.f32 %v69, 1.442695
    %v72 = vpow.pop %v71
    %v73 = vsub.f32 1.0, %v72
    %v74 = vmul.f32 %v73, %v73
    %v75 = vmul.f32 %v74, %v69
    %v76 = vsub.f32 0.0, %v75
    %v77 = vmul.f32 %v70, %v76
    %78 = vadd.xlane.f32.xlu0 %v77
    %v79 = vpop.xlane.xlu0 %78
    %v80 = vrot.slane %v79, 4
    %v81 = vadd.f32 %v79, %v80
    %v82 = vrot.slane %v81, 2
    %v83 = vadd.f32 %v81, %v82
    %v84 = vrot.slane %v83, 1
    %v85 = vadd.f32 %v83, %v84
    %s86 = vtos %v85
    %p87 = scmp.eq.s32.totalorder 0, 0
    // Predicated region
    $region18: #{tpu_custom_call.1} parent=1 // pred_check
      %p88 = pneg %p87
    $region19: #{tpu_custom_call.1} parent=1 // pred_check_branch
      %90 = sbr.rel (%p88) target = $region21
    $region20: #{tpu_custom_call.1} parent=1 // pred_region
      %vm91 = vcmask 0
      %92 = vst.msk [vmem:[#allocation7] sm:$0x1] %vm91, 0.0
    $region21: #{tpu_custom_call.1} parent=1 // pred_fallthru
      _
    %v93 = vld [vmem:[#allocation7] sm:$0x1]
    %v94 = vstv %s86
    %v95 = vadd.f32 %v93, %v94
    %vm96 = vcmask 0
    %97 = vst.msk [vmem:[#allocation7] sm:$0x1] %vm96, %v95
    // Predicated region
    $region22: #{tpu_custom_call.1} parent=1 // pred_check
      _
    $region23: #{tpu_custom_call.1} parent=1 // pred_check_branch
      %99 = sbr.rel (0) target = $region25
    $region24: #{tpu_custom_call.1} parent=1 // pred_region
      %s101 = ssub.s32 16, 16
      %102 = vsyncadd [#allocation4], %s101
      %s104 = sshll.u32 [#allocation7], 4
      %s105 = int_to_ptr.vmem [resolvable:$true] %s104
      %107 = dma.vmem_to_hbm [thread:$0]  %s105, 16, %s2, [#allocation4]
    $region25: #{tpu_custom_call.1} parent=1 // pred_fallthru
      _
    // Predicated region
    $region26: #{tpu_custom_call.1} parent=1 // pred_check
      _
    $region27: #{tpu_custom_call.1} parent=1 // pred_check_branch
      %109 = sbr.rel (0) target = $region29
    $region28: #{tpu_custom_call.1} parent=1 // pred_region
      %110 = dma.done [#allocation4], 16
    $region29: #{tpu_custom_call.1} parent=1 // pred_fallthru
      _
    %111 = vsyncpa [#allocation3], 1
    %112 = vsyncpa [#allocation6], 1
    %113 = vsyncpa [#allocation4], 1

</llo_original>
